<compile_context>
chip_gen: v7x
topology: tpu7x:2x2x1
jax: 0.10.0
libtpu: 0.0.40
codegen_flags: <defaults>
</compile_context>

<pallas_src>
import functools
import math

import numpy as np
import jax
import jax.numpy as jnp
from jax.experimental import pallas as pl
from jax.experimental.pallas import tpu as pltpu


def _round_up(x, m):
    return (x + m - 1) // m * m


def _textclass_kernel(cls_ref, p_ref, w1c_ref, w2_ref, b2_ref, w3r_ref, b3_ref,
                      out_ref, *, compute_dtype):
    """One grid step = one block of BC target nodes.

    cls_ref  : (BC, D)    class-node embeddings for this block
    p_ref    : (Lp, Hp)   precomputed label half of layer 1: label_emb @ W1[D:] + b1
    w1c_ref  : (D, Hp)    class half of W1 (H zero-padded to Hp)
    w2_ref   : (Hp, D), b2_ref (1, D)
    w3r_ref  : (1, D)     W3 transposed (task_dim == 1)
    b3_ref   : (1, 1)
    out_ref  : (rows_blk, 128)  lane-dense score slab; rows_blk*128 == BC*Lp
    """
    BC, D = cls_ref.shape
    Lp, Hp = p_ref.shape

    # Layer 1, class half (MXU): (BC, D) @ (D, Hp) -> (BC, Hp)
    u = jnp.dot(cls_ref[...].astype(compute_dtype),
                w1c_ref[...].astype(compute_dtype),
                preferred_element_type=jnp.float32)

    # Pair construction fused with layer 1: h1[c, l, :] = relu(u[c] + P[l]).
    # (== cat([repeat_interleave(cls, L), tile(label, C)], -1) @ W1 + b1, then ReLU)
    h1 = jnp.maximum(u[:, None, :] + p_ref[...][None, :, :], 0.0)   # (BC, Lp, Hp) f32
    h1 = h1.reshape(BC * Lp, Hp)

    # Layer 2 (MXU): (BC*Lp, Hp) @ (Hp, D) -> (BC*Lp, D); epilogue in f32.
    h2 = jnp.dot(h1.astype(compute_dtype), w2_ref[...].astype(compute_dtype),
                 preferred_element_type=jnp.float32)
    h2 = jnp.maximum(h2 + b2_ref[...], 0.0)

    # Layer 3 (task_dim == 1): VPU multiply + lane reduction instead of an
    # N=1-column MXU matmul.
    h2 = h2.reshape(BC, Lp, D)
    scores = jnp.sum(h2 * w3r_ref[...][None, :, :], axis=-1) + b3_ref[...]  # (BC, Lp)

    # Lane-dense output slab (multiple of 128 lanes) -> unmasked stores.
    out_ref[...] = scores.reshape(out_ref.shape).astype(out_ref.dtype)


def textclass_forward(class_emb, label_emb, params, block_c=None):
    """Fused pair-construction + MLP.

    class_emb : (C, D) float   embeddings of the target nodes
    label_emb : (L, D) float   self.emb
    returns   : (C, L) float32 == MLP(att_emb).view(-1, L)
    """
    C, D = class_emb.shape
    L, Dl = label_emb.shape
    assert Dl == D and C >= 1 and L >= 1
    w1, b1, w2, b2, w3, b3 = params
    H = w1.shape[1]
    assert w1.shape[0] == 2 * D, "MLP expects concat([class, label]) input"
    assert w3.shape[1] == 1, "kernel assumes task_dim == 1"

    f32 = jnp.float32
    class_emb = class_emb.astype(f32)

    # ---- grid-invariant preprocessing (once, in the wrapper) ----------------
    # Split W1: the label half (incl. b1) is grid-invariant -> precompute P.
    w1_cls = w1[:D, :].astype(f32)                               # (D, H)
    p_label = (label_emb.astype(f32) @ w1[D:, :].astype(f32)
               + b1.astype(f32))                                 # (L, H)
    w2_f = w2.astype(f32)                                        # (H, D)
    b2_r = jnp.asarray(b2, f32).reshape(1, D)
    w3_row = w3.T.astype(f32)                                    # (1, D)
    b3_s = jnp.asarray(b3, f32).reshape(1, 1)

    # Pad the label axis to a multiple of 8 -> in-kernel reshapes are layout no-ops.
    Lp = _round_up(L, 8)
    if Lp != L:
        p_label = jnp.pad(p_label, ((0, Lp - L), (0, 0)))

    # Pad hidden dim H to a full 128-lane multiple (zero cols of W1c/P, zero rows
    # of W2) -> clean (8,128) layouts; result is bit-identical (padded cols relu to 0
    # and multiply zero W2 rows).
    Hp = _round_up(H, 128)
    if Hp != H:
        w1_cls = jnp.pad(w1_cls, ((0, 0), (0, Hp - H)))
        p_label = jnp.pad(p_label, ((0, 0), (0, Hp - H)))
        w2_f = jnp.pad(w2_f, ((0, Hp - H), (0, 0)))

    # ---- block sizing --------------------------------------------------------
    # Target ~2048 MLP rows per grid step; align so block_c % 8 == 0 and
    # block_c*Lp % 128 == 0 (lane-dense output slab).
    align = max(8, 128 // math.gcd(Lp, 128))
    if block_c is None:
        block_c = max(1, 2048 // Lp)
    block_c = _round_up(min(block_c, C), align)
    # Cap block_c so the f32 h1 intermediate stays small (v7x has only 64 MiB VMEM).
    while block_c > align and block_c * Lp * Hp * 4 > (8 << 20):
        block_c = _round_up(block_c // 2, align)

    n_blocks = pl.cdiv(C, block_c)
    rows_blk = (block_c * Lp) // 128
    if n_blocks > 1 and rows_blk % 8 != 0:
        # Keep the output block sublane-aligned when there are multiple blocks.
        align8 = max(align, 1024 // math.gcd(Lp, 1024))
        block_c = _round_up(block_c, align8)
        n_blocks = pl.cdiv(C, block_c)
        rows_blk = (block_c * Lp) // 128

    c_pad = n_blocks * block_c
    if c_pad != C:
        class_emb = jnp.pad(class_emb, ((0, c_pad - C), (0, 0)))
    rows_tot = n_blocks * rows_blk

    # bf16 matmul operands only at production D; keep all elementwise work in f32.
    compute_dtype = jnp.bfloat16 if D >= 128 else jnp.float32
    kernel = functools.partial(_textclass_kernel, compute_dtype=compute_dtype)

    full = lambda r, c: pl.BlockSpec((r, c), lambda i: (0, 0))

    flops = (2 * c_pad * D * Hp            # layer-1 class-half matmul
             + 2 * c_pad * Lp * Hp         # pair add + relu
             + 2 * c_pad * Lp * Hp * D     # layer-2 matmul
             + 2 * c_pad * Lp * D)         # layer-3 dot
    bytes_accessed = 4 * (c_pad * D + Lp * Hp + D * Hp + Hp * D + 2 * D + 1
                          + c_pad * Lp)

    # VMEM budget: double-buffered input/output blocks + f32 intermediates.
    vmem_est = 4 * (2 * (block_c * D + Lp * Hp + D * Hp + Hp * D + 2 * D + 1
                         + rows_blk * 128)
                    + block_c * Hp + block_c * Lp * Hp + 2 * block_c * Lp * D)
    vmem_limit = int(min(64 << 20, max(32 << 20, 2 * vmem_est)))

    out = pl.pallas_call(
        kernel,
        out_shape=jax.ShapeDtypeStruct((rows_tot, 128), jnp.float32),
        grid_spec=pltpu.PrefetchScalarGridSpec(
            num_scalar_prefetch=0,
            grid=(n_blocks,),
            in_specs=[
                pl.BlockSpec((block_c, D), lambda i: (i, 0)),   # class rows (blocked)
                full(Lp, Hp),        # P = label_emb @ W1[D:] + b1   (padded)
                full(D, Hp),         # W1[:D]                        (padded)
                full(Hp, D),         # W2                            (padded)
                full(1, D),          # b2
                full(1, D),          # W3^T
                full(1, 1),          # b3
            ],
            out_specs=pl.BlockSpec((rows_blk, 128), lambda i: (i, 0)),
        ),
        compiler_params=pltpu.CompilerParams(
            # TODO(synk): on v7x, try pltpu.CORE_PARALLEL / pl.core_map over
            # create_tensorcore_mesh to shard blocks across both TensorCores.
            dimension_semantics=("parallel",),
            vmem_limit_bytes=vmem_limit),
        cost_estimate=pl.CostEstimate(
            flops=int(flops), transcendentals=0, bytes_accessed=int(bytes_accessed)),
    )(class_emb, p_label, w1_cls, w2_f, b2_r, w3_row, b3_s)

    return out.reshape(c_pad, Lp)[:C, :L]                      # (C, L)


def reference_forward(class_emb, label_emb, params):
    """Plain-JAX reference mirroring the PyTorch code line by line."""
    C, D = class_emb.shape
    L, _ = label_emb.shape
    w1, b1, w2, b2, w3, b3 = params
    att = jnp.repeat(class_emb, L, axis=0)                        # repeat_interleave
    att = jnp.concatenate([att, jnp.tile(label_emb, (C, 1))], -1)
    h = jnp.maximum(att @ w1 + b1, 0.0)
    h = jnp.maximum(h @ w2 + b2, 0.0)
    res = h @ w3 + b3
    return res.reshape(-1, L)


if __name__ == "__main__":
    # ---- small, deterministic problem sizes --------------------------------
    N = 10        # total graph nodes
    F_IN = 16     # raw node feature dim fed to the backbone
    D = 32        # outdim
    L = 8         # len(self.emb)  (number of label embeddings)
    T = 1         # task_dim

    key = jax.random.PRNGKey(0)
    k_x, k_m, k_emb, k1, k2, k3 = jax.random.split(key, 6)

    # raw graph node features + target-node mask
    x = jax.random.normal(k_x, (N, F_IN), dtype=jnp.float32)
    target_node_mask = np.zeros(N, dtype=bool)
    target_node_mask[[1, 4, 7]] = True                     # C = 3 target nodes

    # TODO(synk): the GNN backbone `self.model(g)` is not defined in the module;
    # stand in with a deterministic linear projection of the node features.
    w_model = jax.random.normal(k_m, (F_IN, D), dtype=jnp.float32) * 0.1
    node_emb = x @ w_model                                  # [N, D]  (glue)

    # label embeddings (self.emb Parameter, shape [L, D])
    label_emb = jax.random.normal(k_emb, (L, D), dtype=jnp.float32) * 0.1

    # MLP([2D, 2D, D, T]) parameters: Linear+ReLU, Linear+ReLU, Linear
    def lin(k, fan_in, fan_out):
        return jax.random.normal(k, (fan_in, fan_out), dtype=jnp.float32) * (fan_in ** -0.5)

    params = (
        lin(k1, 2 * D, 2 * D), jnp.zeros((1, 2 * D), jnp.float32),
        lin(k2, 2 * D, D),     jnp.zeros((1, D), jnp.float32),
        lin(k3, D, T),         jnp.zeros((1, T), jnp.float32),
    )

    # class_emb = emb[g.target_node_mask]   (glue; concrete boolean mask)
    class_emb = jnp.asarray(np.asarray(node_emb)[target_node_mask])  # [C, D]

    res = textclass_forward(class_emb, label_emb, params)
    res = jax.block_until_ready(res)

    ref = reference_forward(class_emb, label_emb, params)
    np.testing.assert_allclose(np.asarray(res), np.asarray(ref), rtol=1e-5, atol=1e-5)

    print("KERNEL_OK")
</pallas_src>

<mosaic_0001>
module attributes {stable_mosaic.version = 11 : i64} {
  func.func @_textclass_kernel(%arg0: i32, %arg1: memref<16x32xf32, #tpu.memory_space<vmem>>, %arg2: memref<8x128xf32, #tpu.memory_space<vmem>>, %arg3: memref<32x128xf32, #tpu.memory_space<vmem>>, %arg4: memref<128x32xf32, #tpu.memory_space<vmem>>, %arg5: memref<1x32xf32, #tpu.memory_space<vmem>>, %arg6: memref<1x32xf32, #tpu.memory_space<vmem>>, %arg7: memref<1x1xf32, #tpu.memory_space<vmem>>, %arg8: memref<1x128xf32, #tpu.memory_space<vmem>>) attributes {dimension_semantics = [#tpu.dimension_semantics<parallel>], iteration_bounds = array<i64: 1>, scalar_prefetch = 0 : i64, scratch_operands = 0 : i64, tpu.core_type = #tpu.core_type<tc>, window_params = [{transform_indices = @transform_0, window_bounds = array<i64: 16, 32>}, {pipeline_mode = #tpu.pipeline_mode<synchronous>, transform_indices = @transform_1, window_bounds = array<i64: 8, 128>}, {pipeline_mode = #tpu.pipeline_mode<synchronous>, transform_indices = @transform_2, window_bounds = array<i64: 32, 128>}, {pipeline_mode = #tpu.pipeline_mode<synchronous>, transform_indices = @transform_3, window_bounds = array<i64: 128, 32>}, {pipeline_mode = #tpu.pipeline_mode<synchronous>, transform_indices = @transform_4, window_bounds = array<i64: 1, 32>}, {pipeline_mode = #tpu.pipeline_mode<synchronous>, transform_indices = @transform_5, window_bounds = array<i64: 1, 32>}, {pipeline_mode = #tpu.pipeline_mode<synchronous>, transform_indices = @transform_6, window_bounds = array<i64: 1, 1>}, {transform_indices = @transform_7, window_bounds = array<i64: 1, 128>}]} {
    %c0 = arith.constant 0 : index
    %c0_0 = arith.constant 0 : index
    %0 = vector.load %arg1[%c0, %c0_0] : memref<16x32xf32, #tpu.memory_space<vmem>>, vector<16x32xf32>
    %c0_1 = arith.constant 0 : index
    %c0_2 = arith.constant 0 : index
    %1 = vector.load %arg3[%c0_1, %c0_2] : memref<32x128xf32, #tpu.memory_space<vmem>>, vector<32x128xf32>
    %cst = arith.constant dense<0.000000e+00> : vector<16x128xf32>
    %2 = tpu.matmul %0, %1, %cst {dimension_numbers = #tpu.dot_dimension_numbers<[1], [0], [0], [1], [0, 0, 1, 1], [], []>} : vector<16x32xf32>, vector<32x128xf32>, vector<16x128xf32> -> vector<16x128xf32>
    %3 = vector.shape_cast %2 : vector<16x128xf32> to vector<16x1x128xf32>
    %c0_3 = arith.constant 0 : index
    %c0_4 = arith.constant 0 : index
    %4 = vector.load %arg2[%c0_3, %c0_4] : memref<8x128xf32, #tpu.memory_space<vmem>>, vector<8x128xf32>
    %5 = vector.shape_cast %4 : vector<8x128xf32> to vector<1x8x128xf32>
    %6 = vector.broadcast %3 : vector<16x1x128xf32> to vector<16x8x128xf32>
    %7 = vector.broadcast %5 : vector<1x8x128xf32> to vector<16x8x128xf32>
    %8 = arith.addf %6, %7 : vector<16x8x128xf32>
    %cst_5 = arith.constant 0.000000e+00 : f32
    %9 = vector.broadcast %cst_5 : f32 to vector<16x8x128xf32>
    %10 = arith.maximumf %8, %9 : vector<16x8x128xf32>
    %11 = vector.shape_cast %10 : vector<16x8x128xf32> to vector<128x128xf32>
    %c0_6 = arith.constant 0 : index
    %c0_7 = arith.constant 0 : index
    %12 = vector.load %arg4[%c0_6, %c0_7] : memref<128x32xf32, #tpu.memory_space<vmem>>, vector<128x32xf32>
    %cst_8 = arith.constant dense<0.000000e+00> : vector<128x32xf32>
    %13 = tpu.matmul %11, %12, %cst_8 {dimension_numbers = #tpu.dot_dimension_numbers<[1], [0], [0], [1], [0, 0, 1, 1], [], []>} : vector<128x128xf32>, vector<128x32xf32>, vector<128x32xf32> -> vector<128x32xf32>
    %c0_9 = arith.constant 0 : index
    %c0_10 = arith.constant 0 : index
    %14 = vector.load %arg5[%c0_9, %c0_10] : memref<1x32xf32, #tpu.memory_space<vmem>>, vector<1x32xf32>
    %15 = vector.broadcast %14 : vector<1x32xf32> to vector<128x32xf32>
    %16 = arith.addf %13, %15 : vector<128x32xf32>
    %cst_11 = arith.constant 0.000000e+00 : f32
    %17 = vector.broadcast %cst_11 : f32 to vector<128x32xf32>
    %18 = arith.maximumf %16, %17 : vector<128x32xf32>
    %19 = vector.shape_cast %18 : vector<128x32xf32> to vector<16x8x32xf32>
    %c0_12 = arith.constant 0 : index
    %c0_13 = arith.constant 0 : index
    %20 = vector.load %arg6[%c0_12, %c0_13] : memref<1x32xf32, #tpu.memory_space<vmem>>, vector<1x32xf32>
    %21 = vector.shape_cast %20 : vector<1x32xf32> to vector<1x1x32xf32>
    %22 = vector.broadcast %21 : vector<1x1x32xf32> to vector<16x8x32xf32>
    %23 = arith.mulf %19, %22 : vector<16x8x32xf32>
    %cst_14 = arith.constant dense<0.000000e+00> : vector<16x8xf32>
    %24 = vector.multi_reduction <add>, %23, %cst_14 [2] : vector<16x8x32xf32> to vector<16x8xf32>
    %c0_15 = arith.constant 0 : index
    %c0_16 = arith.constant 0 : index
    %25 = vector.load %arg7[%c0_15, %c0_16] : memref<1x1xf32, #tpu.memory_space<vmem>>, vector<1x1xf32>
    %26 = vector.broadcast %25 : vector<1x1xf32> to vector<16x8xf32>
    %27 = arith.addf %24, %26 : vector<16x8xf32>
    %28 = vector.shape_cast %27 : vector<16x8xf32> to vector<1x128xf32>
    %c0_17 = arith.constant 0 : index
    %c0_18 = arith.constant 0 : index
    %29 = vector.load %arg8[%c0_17, %c0_18] : memref<1x128xf32, #tpu.memory_space<vmem>>, vector<1x128xf32>
    tpu.vector_store %arg8[%c0_17, %c0_18], %28 {strides = array<i32>} : memref<1x128xf32, #tpu.memory_space<vmem>>, vector<1x128xf32>,
    return
  }
  func.func @transform_0(%arg0: i32) -> (i32, i32) {
    %c0_i32 = arith.constant 0 : i32
    %c0_i32_0 = arith.constant 0 : i32
    return %arg0, %c0_i32 : i32, i32
  }
  func.func @transform_1(%arg0: i32) -> (i32, i32) {
    %c0_i32 = arith.constant 0 : i32
    %c0_i32_0 = arith.constant 0 : i32
    %c0_i32_1 = arith.constant 0 : i32
    return %c0_i32, %c0_i32_0 : i32, i32
  }
  func.func @transform_2(%arg0: i32) -> (i32, i32) {
    %c0_i32 = arith.constant 0 : i32
    %c0_i32_0 = arith.constant 0 : i32
    %c0_i32_1 = arith.constant 0 : i32
    return %c0_i32, %c0_i32_0 : i32, i32
  }
  func.func @transform_3(%arg0: i32) -> (i32, i32) {
    %c0_i32 = arith.constant 0 : i32
    %c0_i32_0 = arith.constant 0 : i32
    %c0_i32_1 = arith.constant 0 : i32
    return %c0_i32, %c0_i32_0 : i32, i32
  }
  func.func @transform_4(%arg0: i32) -> (i32, i32) {
    %c0_i32 = arith.constant 0 : i32
    %c0_i32_0 = arith.constant 0 : i32
    %c0_i32_1 = arith.constant 0 : i32
    return %c0_i32, %c0_i32_0 : i32, i32
  }
  func.func @transform_5(%arg0: i32) -> (i32, i32) {
    %c0_i32 = arith.constant 0 : i32
    %c0_i32_0 = arith.constant 0 : i32
    %c0_i32_1 = arith.constant 0 : i32
    return %c0_i32, %c0_i32_0 : i32, i32
  }
  func.func @transform_6(%arg0: i32) -> (i32, i32) {
    %c0_i32 = arith.constant 0 : i32
    %c0_i32_0 = arith.constant 0 : i32
    %c0_i32_1 = arith.constant 0 : i32
    return %c0_i32, %c0_i32_0 : i32, i32
  }
  func.func @transform_7(%arg0: i32) -> (i32, i32) {
    %c0_i32 = arith.constant 0 : i32
    %c0_i32_0 = arith.constant 0 : i32
    return %arg0, %c0_i32 : i32, i32
  }
}

</mosaic_0001>

<llo_original>
// kernel: tpu_custom_call.1
$region0: #{tpu_custom_call.1}
  #allocation0 [shape = 'u32[]', space=smem, size = 0x4, offset = 0x4, fixed_abs, tag = 'smem constant byte address 0x4 - core index']
  #allocation1 [shape = 'u32[144,128]{1,0:T(1,128)}', space=vmem, size = 0x12000, scoped, tag = 'internal scratch']
  #allocation2 [shape = 'f32[1,1]{1,0:T(1,128)S(1)}', space=vmem, size = 0x200, scoped, tag = 'scoped memory for tpu_custom_call.1']
  %s0 = inlined_call_operand.vmem [shape: f32[16,32], index: 0, kind: input, shape index: {}]
  %s1 = inlined_call_operand.vmem [shape: f32[8,128], index: 1, kind: input, shape index: {}]
  %s2 = inlined_call_operand.vmem [shape: f32[32,128], index: 2, kind: input, shape index: {}]
  %s3 = inlined_call_operand.vmem [shape: f32[128,32], index: 3, kind: input, shape index: {}]
  %s4 = inlined_call_operand.vmem [shape: f32[1,32], index: 4, kind: input, shape index: {}]
  %s5 = inlined_call_operand.vmem [shape: f32[1,32], index: 5, kind: input, shape index: {}]
  %s6 = inlined_call_operand.<no memory space> [shape: f32[1,1], index: 6, kind: input, shape index: {}]
  %s7 = inlined_call_operand.hbm [shape: f32[1,128], index: 7, kind: output, shape index: {}]
  %s8 = sld [smem:[#allocation0]]
  $region38: #{tpu_custom_call.1} parent=0
    _
  %s10 = ssub.s32 1, %s8
  %s11 = scalar_select 0, %s10, %s8
  %v12 = vstv %s6
  %13 = vst [vmem:[#allocation2] sm:$0x1] %v12
  $region1: #{tpu_custom_call.1} parent=0
    #allocation3 [shape = 'u8[512]{0}', space=vmem, size = 0x400, scoped, tag = 'output window, operand 0, single buffered']
    #allocation4 [shape = 's32[1]{0}', space=sflag, size = 0x4, scoped, tag = 'scoped memory for tpu_custom_call.1']
    %14 = vsyncpa [#allocation4], 0
    // Predicated region
    $region2: #{tpu_custom_call.1} parent=1 // pred_check
      _
    $region3: #{tpu_custom_call.1} parent=1 // pred_check_branch
      %16 = sbr.rel (0) target = $region5
    $region4: #{tpu_custom_call.1} parent=1 // pred_region
      _
    $region5: #{tpu_custom_call.1} parent=1 // pred_fallthru
      _
    // Predicated region
    $region6: #{tpu_custom_call.1} parent=1 // pred_check
      _
    $region7: #{tpu_custom_call.1} parent=1 // pred_check_branch
      %18 = sbr.rel (0) target = $region9
    $region8: #{tpu_custom_call.1} parent=1 // pred_region
      _
    $region9: #{tpu_custom_call.1} parent=1 // pred_fallthru
      _
    // Predicated region
    $region10: #{tpu_custom_call.1} parent=1 // pred_check
      _
    $region11: #{tpu_custom_call.1} parent=1 // pred_check_branch
      %20 = sbr.rel (0) target = $region13
    $region12: #{tpu_custom_call.1} parent=1 // pred_region
      _
    $region13: #{tpu_custom_call.1} parent=1 // pred_fallthru
      _
    // Predicated region
    $region14: #{tpu_custom_call.1} parent=1 // pred_check
      _
    $region15: #{tpu_custom_call.1} parent=1 // pred_check_branch
      %22 = sbr.rel (0) target = $region17
    $region16: #{tpu_custom_call.1} parent=1 // pred_region
      _
    $region17: #{tpu_custom_call.1} parent=1 // pred_fallthru
      _
    // Predicated region
    $region18: #{tpu_custom_call.1} parent=1 // pred_check
      _
    $region19: #{tpu_custom_call.1} parent=1 // pred_check_branch
      %24 = sbr.rel (0) target = $region21
    $region20: #{tpu_custom_call.1} parent=1 // pred_region
      _
    $region21: #{tpu_custom_call.1} parent=1 // pred_fallthru
      _
    // Predicated region
    $region22: #{tpu_custom_call.1} parent=1 // pred_check
      _
    $region23: #{tpu_custom_call.1} parent=1 // pred_check_branch
      %26 = sbr.rel (0) target = $region25
    $region24: #{tpu_custom_call.1} parent=1 // pred_region
      _
    $region25: #{tpu_custom_call.1} parent=1 // pred_fallthru
      _
    // Predicated region
    $region26: #{tpu_custom_call.1} parent=1 // pred_check
      _
    $region27: #{tpu_custom_call.1} parent=1 // pred_check_branch
      %28 = sbr.rel (0) target = $region29
    $region28: #{tpu_custom_call.1} parent=1 // pred_region
      _
    $region29: #{tpu_custom_call.1} parent=1 // pred_fallthru
      _
    %v29 = vld [vmem:[%s0] sm:$0xff]
    %v30 = vld [vmem:[%s0 + $0x8] sm:$0xff]
    %v31 = vld [vmem:[%s2] sm:$0xff]
    %v32 = vld [vmem:[%s2 + $0x8] sm:$0xff]
    %v33 = vld [vmem:[%s2 + $0x10] sm:$0xff]
    %v34 = vld [vmem:[%s2 + $0x18] sm:$0xff]
    %vm35 = vcmask 261120
    %v37 = vsel %vm35, %v29, 0
    %v40 = vsel %vm35, %v30, 0
    %42 = vmatprep.subr.mxu0 0.0
    %43 = vmatpush1.msra.mxu0 %v31
    %44 = vmatprep.subr.mxu0 0.0
    %45 = vmatpush1.msra.mxu0 %v32
    %46 = vmatprep.subr.mxu0 0.0
    %47 = vmatpush1.msra.mxu0 %v33
    %48 = vmatprep.subr.mxu0 0.0
    %49 = vmatpush1.msra.mxu0 %v34
    %50 = vmatprep.subr.mxu0 0.0
    %51 = vmatpush1.msra.mxu0 0.0
    %52 = vmatprep.subr.mxu0 0.0
    %53 = vmatpush1.msra.mxu0 0.0
    %54 = vmatprep.subr.mxu0 0.0
    %55 = vmatpush1.msra.mxu0 0.0
    %56 = vmatprep.subr.mxu0 0.0
    %57 = vmatpush1.msra.mxu0 0.0
    %58 = vmatprep.subr.mxu0 0.0
    %59 = vmatpush1.msra.mxu0 0.0
    %60 = vmatprep.subr.mxu0 0.0
    %61 = vmatpush1.msra.mxu0 0.0
    %62 = vmatprep.subr.mxu0 0.0
    %63 = vmatpush1.msra.mxu0 0.0
    %64 = vmatprep.subr.mxu0 0.0
    %65 = vmatpush1.msra.mxu0 0.0
    %66 = vmatprep.subr.mxu0 0.0
    %67 = vmatpush1.msra.mxu0 0.0
    %68 = vmatprep.subr.mxu0 0.0
    %69 = vmatpush1.msra.mxu0 0.0
    %70 = vmatprep.subr.mxu0 0.0
    %71 = vmatpush1.msra.mxu0 0.0
    %72 = vmatprep.subr.mxu0 0.0
    %73 = vmatpush1.msra.mxu0 0.0
    %74 = vmatprep.subr.mxu0 0.0
    %75 = vmatpush1.msra.mxu0 0.0
    %76 = vmatprep.subr.mxu0 0.0
    %77 = vmatpush1.msra.mxu0 0.0
    %78 = vmatprep.subr.mxu0 0.0
    %79 = vmatpush1.msra.mxu0 0.0
    %80 = vmatprep.subr.mxu0 0.0
    %81 = vmatpush1.msra.mxu0 0.0
    %82 = vmatprep.subr.mxu0 0.0
    %83 = vmatpush1.msra.mxu0 0.0
    %84 = vmatprep.subr.mxu0 0.0
    %85 = vmatpush1.msra.mxu0 0.0
    %86 = vmatprep.subr.mxu0 0.0
    %87 = vmatpush1.msra.mxu0 0.0
    %88 = vmatprep.subr.mxu0 0.0
    %89 = vmatpush1.msra.mxu0 0.0
    %90 = vmatprep.subr.mxu0 0.0
    %91 = vmatpush1.msra.mxu0 0.0
    %92 = vmatprep.subr.mxu0 0.0
    %93 = vmatpush1.msra.mxu0 0.0
    %94 = vmatprep.subr.mxu0 0.0
    %95 = vmatpush1.msra.mxu0 0.0
    %96 = vmatprep.subr.mxu0 0.0
    %97 = vmatpush1.msra.mxu0 0.0
    %98 = vmatprep.subr.mxu0 0.0
    %99 = vmatpush1.msra.mxu0 0.0
    %100 = vmatprep.subr.mxu0 0.0
    %101 = vmatpush1.msra.mxu0 0.0
    %102 = vmatprep.subr.mxu0 0.0
    %103 = vmatpush1.msra.mxu0 0.0
    %104 = vmatprep.subr.mxu0 0.0
    %105 = vmatpush1.msra.mxu0 0.0
    %106 = vmatprep.mubr.f32.mxu0 0.0
    %107 = vmatmul.mubr.f32.gmra.mrb[0].mxu0 %v37
    %v108 = vpop.f32.mrb[0].mxu0
    %v109 = vadd.f32 0.0, %v108
    %v110 = vpop.f32.mrb[0].mxu0
    %111 = vmatprep.mubr.f32.mxu0 0.0
    %112 = vmatmul.mubr.f32.gmra.mrb[0].mxu0 %v40
    %v113 = vpop.f32.mrb[0].mxu0
    %v114 = vadd.f32 0.0, %v113
    %v115 = vpop.f32.mrb[0].mxu0
    %116 = vdwg.mxu0
    %v119 = vcombine.high %v109, %v109
    %v121 = vunpack.c.l.s4 1966171168
    %v122 = vunpack.c.0.s8 %v121
    %v123 = vlaneseq
    %v124 = vshrl.u32 %v123, 7
    %v125 = vsub.s32 %v122, %v124
    %v126 = vrot.slane %v109, %v125
    %v128 = vunpack.c.l.s4 1966171168
    %v129 = vunpack.c.0.s8 %v128
    %v130 = vlaneseq
    %v131 = vshrl.u32 %v130, 7
    %v132 = vsub.s32 %v129, %v131
    %v133 = vrot.slane %v119, %v132
    %v134 = vcombine.high %v126, %v126
    %v135 = vcombine.high %v133, %v133
    %v137 = vunpack.c.l.s4 1966171168
    %v138 = vunpack.c.0.s8 %v137
    %v139 = vlaneseq
    %v140 = vshrl.u32 %v139, 7
    %v141 = vsub.s32 %v138, %v140
    %v142 = vrot.slane %v126, %v141
    %v144 = vunpack.c.l.s4 1966171168
    %v145 = vunpack.c.0.s8 %v144
    %v146 = vlaneseq
    %v147 = vshrl.u32 %v146, 7
    %v148 = vsub.s32 %v145, %v147
    %v149 = vrot.slane %v133, %v148
    %v151 = vunpack.c.l.s4 1966171168
    %v152 = vunpack.c.0.s8 %v151
    %v153 = vlaneseq
    %v154 = vshrl.u32 %v153, 7
    %v155 = vsub.s32 %v152, %v154
    %v156 = vrot.slane %v134, %v155
    %v158 = vunpack.c.l.s4 1966171168
    %v159 = vunpack.c.0.s8 %v158
    %v160 = vlaneseq
    %v161 = vshrl.u32 %v160, 7
    %v162 = vsub.s32 %v159, %v161
    %v163 = vrot.slane %v135, %v162
    %v164 = vcombine.high %v142, %v142
    %v165 = vcombine.high %v149, %v149
    %v166 = vcombine.high %v156, %v156
    %v167 = vcombine.high %v163, %v163
    %v168 = vcombine.high %v114, %v114
    %v170 = vunpack.c.l.s4 1966171168
    %v171 = vunpack.c.0.s8 %v170
    %v172 = vlaneseq
    %v173 = vshrl.u32 %v172, 7
    %v174 = vsub.s32 %v171, %v173
    %v175 = vrot.slane %v114, %v174
    %v177 = vunpack.c.l.s4 1966171168
    %v178 = vunpack.c.0.s8 %v177
    %v179 = vlaneseq
    %v180 = vshrl.u32 %v179, 7
    %v181 = vsub.s32 %v178, %v180
    %v182 = vrot.slane %v168, %v181
    %v183 = vcombine.high %v175, %v175
    %v184 = vcombine.high %v182, %v182
    %v186 = vunpack.c.l.s4 1966171168
    %v187 = vunpack.c.0.s8 %v186
    %v188 = vlaneseq
    %v189 = vshrl.u32 %v188, 7
    %v190 = vsub.s32 %v187, %v189
    %v191 = vrot.slane %v175, %v190
    %v193 = vunpack.c.l.s4 1966171168
    %v194 = vunpack.c.0.s8 %v193
    %v195 = vlaneseq
    %v196 = vshrl.u32 %v195, 7
    %v197 = vsub.s32 %v194, %v196
    %v198 = vrot.slane %v182, %v197
    %v200 = vunpack.c.l.s4 1966171168
    %v201 = vunpack.c.0.s8 %v200
    %v202 = vlaneseq
    %v203 = vshrl.u32 %v202, 7
    %v204 = vsub.s32 %v201, %v203
    %v205 = vrot.slane %v183, %v204
    %v207 = vunpack.c.l.s4 1966171168
    %v208 = vunpack.c.0.s8 %v207
    %v209 = vlaneseq
    %v210 = vshrl.u32 %v209, 7
    %v211 = vsub.s32 %v208, %v210
    %v212 = vrot.slane %v184, %v211
    %v213 = vcombine.high %v191, %v191
    %v214 = vcombine.high %v198, %v198
    %v215 = vcombine.high %v205, %v205
    %v216 = vcombine.high %v212, %v212
    %v217 = vld [vmem:[%s1] sm:$0xff]
    %v218 = vlaneseq
    %v219 = vshrl.u32 %v218, 7
    %v220 = vsub.s32 0, %v219
    %v221 = vrot.slane %v142, %v220
    %v222 = vlaneseq
    %v223 = vshrl.u32 %v222, 7
    %v224 = vsub.s32 0, %v223
    %v225 = vrot.slane %v156, %v224
    %v226 = vlaneseq
    %v227 = vshrl.u32 %v226, 7
    %v228 = vsub.s32 0, %v227
    %v229 = vrot.slane %v164, %v228
    %v230 = vlaneseq
    %v231 = vshrl.u32 %v230, 7
    %v232 = vsub.s32 0, %v231
    %v233 = vrot.slane %v166, %v232
    %v234 = vlaneseq
    %v235 = vshrl.u32 %v234, 7
    %v236 = vsub.s32 0, %v235
    %v237 = vrot.slane %v149, %v236
    %v238 = vlaneseq
    %v239 = vshrl.u32 %v238, 7
    %v240 = vsub.s32 0, %v239
    %v241 = vrot.slane %v163, %v240
    %v242 = vlaneseq
    %v243 = vshrl.u32 %v242, 7
    %v244 = vsub.s32 0, %v243
    %v245 = vrot.slane %v165, %v244
    %v246 = vlaneseq
    %v247 = vshrl.u32 %v246, 7
    %v248 = vsub.s32 0, %v247
    %v249 = vrot.slane %v167, %v248
    %v250 = vlaneseq
    %v251 = vshrl.u32 %v250, 7
    %v252 = vsub.s32 0, %v251
    %v253 = vrot.slane %v191, %v252
    %v254 = vlaneseq
    %v255 = vshrl.u32 %v254, 7
    %v256 = vsub.s32 0, %v255
    %v257 = vrot.slane %v205, %v256
    %v258 = vlaneseq
    %v259 = vshrl.u32 %v258, 7
    %v260 = vsub.s32 0, %v259
    %v261 = vrot.slane %v213, %v260
    %v262 = vlaneseq
    %v263 = vshrl.u32 %v262, 7
    %v264 = vsub.s32 0, %v263
    %v265 = vrot.slane %v215, %v264
    %v266 = vlaneseq
    %v267 = vshrl.u32 %v266, 7
    %v268 = vsub.s32 0, %v267
    %v269 = vrot.slane %v198, %v268
    %v270 = vlaneseq
    %v271 = vshrl.u32 %v270, 7
    %v272 = vsub.s32 0, %v271
    %v273 = vrot.slane %v212, %v272
    %v274 = vlaneseq
    %v275 = vshrl.u32 %v274, 7
    %v276 = vsub.s32 0, %v275
    %v277 = vrot.slane %v214, %v276
    %v278 = vlaneseq
    %v279 = vshrl.u32 %v278, 7
    %v280 = vsub.s32 0, %v279
    %v281 = vrot.slane %v216, %v280
    %v298 = vadd.f32 %v221, %v217
    %v299 = vadd.f32 %v225, %v217
    %v300 = vadd.f32 %v229, %v217
    %v301 = vadd.f32 %v233, %v217
    %v302 = vadd.f32 %v237, %v217
    %v303 = vadd.f32 %v241, %v217
    %v304 = vadd.f32 %v245, %v217
    %v305 = vadd.f32 %v249, %v217
    %v306 = vadd.f32 %v253, %v217
    %v307 = vadd.f32 %v257, %v217
    %v308 = vadd.f32 %v261, %v217
    %v309 = vadd.f32 %v265, %v217
    %v310 = vadd.f32 %v269, %v217
    %v311 = vadd.f32 %v273, %v217
    %v312 = vadd.f32 %v277, %v217
    %v313 = vadd.f32 %v281, %v217
    %v314 = vmax.f32 %v298, 0.0
    %v315 = vmax.f32 %v299, 0.0
    %v316 = vmax.f32 %v300, 0.0
    %v317 = vmax.f32 %v301, 0.0
    %v318 = vmax.f32 %v302, 0.0
    %v319 = vmax.f32 %v303, 0.0
    %v320 = vmax.f32 %v304, 0.0
    %v321 = vmax.f32 %v305, 0.0
    %v322 = vmax.f32 %v306, 0.0
    %v323 = vmax.f32 %v307, 0.0
    %v324 = vmax.f32 %v308, 0.0
    %v325 = vmax.f32 %v309, 0.0
    %v326 = vmax.f32 %v310, 0.0
    %v327 = vmax.f32 %v311, 0.0
    %v328 = vmax.f32 %v312, 0.0
    %v329 = vmax.f32 %v313, 0.0
    %v330 = vld [vmem:[%s3] sm:$0xff]
    %v331 = vld [vmem:[%s3 + $0x8] sm:$0xff]
    %v332 = vld [vmem:[%s3 + $0x10] sm:$0xff]
    %v333 = vld [vmem:[%s3 + $0x18] sm:$0xff]
    %v334 = vld [vmem:[%s3 + $0x20] sm:$0xff]
    %v335 = vld [vmem:[%s3 + $0x28] sm:$0xff]
    %v336 = vld [vmem:[%s3 + $0x30] sm:$0xff]
    %v337 = vld [vmem:[%s3 + $0x38] sm:$0xff]
    %v338 = vld [vmem:[%s3 + $0x40] sm:$0xff]
    %v339 = vld [vmem:[%s3 + $0x48] sm:$0xff]
    %v340 = vld [vmem:[%s3 + $0x50] sm:$0xff]
    %v341 = vld [vmem:[%s3 + $0x58] sm:$0xff]
    %v342 = vld [vmem:[%s3 + $0x60] sm:$0xff]
    %v343 = vld [vmem:[%s3 + $0x68] sm:$0xff]
    %v344 = vld [vmem:[%s3 + $0x70] sm:$0xff]
    %v345 = vld [vmem:[%s3 + $0x78] sm:$0xff]
    %v346 = vld [vmem:[%s4] sm:$0x1]
    %v348 = vlaneseq
    %v349 = vshrl.u32 %v348, 7
    %v350 = vsub.s32 0, %v349
    %v351 = vrot.slane %v346, %v350
    %353 = vmatprep.subr.mxu0 0.0
    %354 = vmatpush1.msra.mxu0 %v330
    %355 = vmatprep.subr.mxu0 0.0
    %356 = vmatpush1.msra.mxu0 %v331
    %357 = vmatprep.subr.mxu0 0.0
    %358 = vmatpush1.msra.mxu0 %v332
    %359 = vmatprep.subr.mxu0 0.0
    %360 = vmatpush1.msra.mxu0 %v333
    %361 = vmatprep.subr.mxu0 0.0
    %362 = vmatpush1.msra.mxu0 %v334
    %363 = vmatprep.subr.mxu0 0.0
    %364 = vmatpush1.msra.mxu0 %v335
    %365 = vmatprep.subr.mxu0 0.0
    %366 = vmatpush1.msra.mxu0 %v336
    %367 = vmatprep.subr.mxu0 0.0
    %368 = vmatpush1.msra.mxu0 %v337
    %369 = vmatprep.subr.mxu0 0.0
    %370 = vmatpush1.msra.mxu0 %v338
    %371 = vmatprep.subr.mxu0 0.0
    %372 = vmatpush1.msra.mxu0 %v339
    %373 = vmatprep.subr.mxu0 0.0
    %374 = vmatpush1.msra.mxu0 %v340
    %375 = vmatprep.subr.mxu0 0.0
    %376 = vmatpush1.msra.mxu0 %v341
    %377 = vmatprep.subr.mxu0 0.0
    %378 = vmatpush1.msra.mxu0 %v342
    %379 = vmatprep.subr.mxu0 0.0
    %380 = vmatpush1.msra.mxu0 %v343
    %381 = vmatprep.subr.mxu0 0.0
    %382 = vmatpush1.msra.mxu0 %v344
    %383 = vmatprep.subr.mxu0 0.0
    %384 = vmatpush1.msra.mxu0 %v345
    %385 = vmatprep.subr.mxu0 0.0
    %386 = vmatpush1.msra.mxu0 0.0
    %387 = vmatprep.subr.mxu0 0.0
    %388 = vmatpush1.msra.mxu0 0.0
    %389 = vmatprep.subr.mxu0 0.0
    %390 = vmatpush1.msra.mxu0 0.0
    %391 = vmatprep.subr.mxu0 0.0
    %392 = vmatpush1.msra.mxu0 0.0
    %393 = vmatprep.subr.mxu0 0.0
    %394 = vmatpush1.msra.mxu0 0.0
    %395 = vmatprep.subr.mxu0 0.0
    %396 = vmatpush1.msra.mxu0 0.0
    %397 = vmatprep.subr.mxu0 0.0
    %398 = vmatpush1.msra.mxu0 0.0
    %399 = vmatprep.subr.mxu0 0.0
    %400 = vmatpush1.msra.mxu0 0.0
    %401 = vmatprep.subr.mxu0 0.0
    %402 = vmatpush1.msra.mxu0 0.0
    %403 = vmatprep.subr.mxu0 0.0
    %404 = vmatpush1.msra.mxu0 0.0
    %405 = vmatprep.subr.mxu0 0.0
    %406 = vmatpush1.msra.mxu0 0.0
    %407 = vmatprep.subr.mxu0 0.0
    %408 = vmatpush1.msra.mxu0 0.0
    %409 = vmatprep.subr.mxu0 0.0
    %410 = vmatpush1.msra.mxu0 0.0
    %411 = vmatprep.subr.mxu0 0.0
    %412 = vmatpush1.msra.mxu0 0.0
    %413 = vmatprep.subr.mxu0 0.0
    %414 = vmatpush1.msra.mxu0 0.0
    %415 = vmatprep.subr.mxu0 0.0
    %416 = vmatpush1.msra.mxu0 0.0
    %417 = vmatprep.mubr.f32.mxu0 0.0
    %418 = vmatmul.mubr.f32.gmra.mrb[0].mxu0 %v314
    %v419 = vpop.f32.mrb[0].mxu0
    %v420 = vadd.f32 %v351, %v419
    %v421 = vpop.f32.mrb[0].mxu0
    %422 = vmatprep.mubr.f32.mxu0 0.0
    %423 = vmatmul.mubr.f32.gmra.mrb[0].mxu0 %v315
    %v424 = vpop.f32.mrb[0].mxu0
    %v425 = vadd.f32 %v351, %v424
    %v426 = vpop.f32.mrb[0].mxu0
    %427 = vmatprep.mubr.f32.mxu0 0.0
    %428 = vmatmul.mubr.f32.gmra.mrb[0].mxu0 %v316
    %v429 = vpop.f32.mrb[0].mxu0
    %v430 = vadd.f32 %v351, %v429
    %v431 = vpop.f32.mrb[0].mxu0
    %432 = vmatprep.mubr.f32.mxu0 0.0
    %433 = vmatmul.mubr.f32.gmra.mrb[0].mxu0 %v317
    %v434 = vpop.f32.mrb[0].mxu0
    %v435 = vadd.f32 %v351, %v434
    %v436 = vpop.f32.mrb[0].mxu0
    %437 = vmatprep.mubr.f32.mxu0 0.0
    %438 = vmatmul.mubr.f32.gmra.mrb[0].mxu0 %v318
    %v439 = vpop.f32.mrb[0].mxu0
    %v440 = vadd.f32 %v351, %v439
    %v441 = vpop.f32.mrb[0].mxu0
    %442 = vmatprep.mubr.f32.mxu0 0.0
    %443 = vmatmul.mubr.f32.gmra.mrb[0].mxu0 %v319
    %v444 = vpop.f32.mrb[0].mxu0
    %v445 = vadd.f32 %v351, %v444
    %v446 = vpop.f32.mrb[0].mxu0
    %447 = vmatprep.mubr.f32.mxu0 0.0
    %448 = vmatmul.mubr.f32.gmra.mrb[0].mxu0 %v320
    %v449 = vpop.f32.mrb[0].mxu0
    %v450 = vadd.f32 %v351, %v449
    %v451 = vpop.f32.mrb[0].mxu0
    %452 = vmatprep.mubr.f32.mxu0 0.0
    %453 = vmatmul.mubr.f32.gmra.mrb[0].mxu0 %v321
    %v454 = vpop.f32.mrb[0].mxu0
    %v455 = vadd.f32 %v351, %v454
    %v456 = vpop.f32.mrb[0].mxu0
    %457 = vmatprep.mubr.f32.mxu0 0.0
    %458 = vmatmul.mubr.f32.gmra.mrb[0].mxu0 %v322
    %v459 = vpop.f32.mrb[0].mxu0
    %v460 = vadd.f32 %v351, %v459
    %v461 = vpop.f32.mrb[0].mxu0
    %462 = vmatprep.mubr.f32.mxu0 0.0
    %463 = vmatmul.mubr.f32.gmra.mrb[0].mxu0 %v323
    %v464 = vpop.f32.mrb[0].mxu0
    %v465 = vadd.f32 %v351, %v464
    %v466 = vpop.f32.mrb[0].mxu0
    %467 = vmatprep.mubr.f32.mxu0 0.0
    %468 = vmatmul.mubr.f32.gmra.mrb[0].mxu0 %v324
    %v469 = vpop.f32.mrb[0].mxu0
    %v470 = vadd.f32 %v351, %v469
    %v471 = vpop.f32.mrb[0].mxu0
    %472 = vmatprep.mubr.f32.mxu0 0.0
    %473 = vmatmul.mubr.f32.gmra.mrb[0].mxu0 %v325
    %v474 = vpop.f32.mrb[0].mxu0
    %v475 = vadd.f32 %v351, %v474
    %v476 = vpop.f32.mrb[0].mxu0
    %477 = vmatprep.mubr.f32.mxu0 0.0
    %478 = vmatmul.mubr.f32.gmra.mrb[0].mxu0 %v326
    %v479 = vpop.f32.mrb[0].mxu0
    %v480 = vadd.f32 %v351, %v479
    %v481 = vpop.f32.mrb[0].mxu0
    %482 = vmatprep.mubr.f32.mxu0 0.0
    %483 = vmatmul.mubr.f32.gmra.mrb[0].mxu0 %v327
    %v484 = vpop.f32.mrb[0].mxu0
    %v485 = vadd.f32 %v351, %v484
    %v486 = vpop.f32.mrb[0].mxu0
    %487 = vmatprep.mubr.f32.mxu0 0.0
    %488 = vmatmul.mubr.f32.gmra.mrb[0].mxu0 %v328
    %v489 = vpop.f32.mrb[0].mxu0
    %v490 = vadd.f32 %v351, %v489
    %v491 = vpop.f32.mrb[0].mxu0
    %492 = vmatprep.mubr.f32.mxu0 0.0
    %493 = vmatmul.mubr.f32.gmra.mrb[0].mxu0 %v329
    %v494 = vpop.f32.mrb[0].mxu0
    %v495 = vadd.f32 %v351, %v494
    %v496 = vpop.f32.mrb[0].mxu0
    %497 = vdwg.mxu0
    %v498 = vmax.f32 %v420, 0.0
    %v499 = vmax.f32 %v425, 0.0
    %v500 = vmax.f32 %v430, 0.0
    %v501 = vmax.f32 %v435, 0.0
    %v502 = vmax.f32 %v440, 0.0
    %v503 = vmax.f32 %v445, 0.0
    %v504 = vmax.f32 %v450, 0.0
    %v505 = vmax.f32 %v455, 0.0
    %v506 = vmax.f32 %v460, 0.0
    %v507 = vmax.f32 %v465, 0.0
    %v508 = vmax.f32 %v470, 0.0
    %v509 = vmax.f32 %v475, 0.0
    %v510 = vmax.f32 %v480, 0.0
    %v511 = vmax.f32 %v485, 0.0
    %v512 = vmax.f32 %v490, 0.0
    %v513 = vmax.f32 %v495, 0.0
    %v514 = vld [vmem:[%s5] sm:$0x1]
    %v516 = vlaneseq
    %v517 = vshrl.u32 %v516, 7
    %v518 = vsub.s32 0, %v517
    %v519 = vrot.slane %v514, %v518
    %v521 = vmul.f32 %v498, %v519
    %v522 = vmul.f32 %v499, %v519
    %v523 = vmul.f32 %v500, %v519
    %v524 = vmul.f32 %v501, %v519
    %v525 = vmul.f32 %v502, %v519
    %v526 = vmul.f32 %v503, %v519
    %v527 = vmul.f32 %v504, %v519
    %v528 = vmul.f32 %v505, %v519
    %v529 = vmul.f32 %v506, %v519
    %v530 = vmul.f32 %v507, %v519
    %v531 = vmul.f32 %v508, %v519
    %v532 = vmul.f32 %v509, %v519
    %v533 = vmul.f32 %v510, %v519
    %v534 = vmul.f32 %v511, %v519
    %v535 = vmul.f32 %v512, %v519
    %v536 = vmul.f32 %v513, %v519
    %v537 = vsel %vm35, %v521, 0.0
    %538 = vadd.xlane.f32.xlu0 %v537
    %v539 = vpop.xlane.xlu0 %538
    %v540 = vsel %vm35, %v522, 0.0
    %541 = vadd.xlane.f32.xlu0 %v540
    %v542 = vpop.xlane.xlu0 %541
    %v543 = vsel %vm35, %v523, 0.0
    %544 = vadd.xlane.f32.xlu0 %v543
    %v545 = vpop.xlane.xlu0 %544
    %v546 = vsel %vm35, %v524, 0.0
    %547 = vadd.xlane.f32.xlu0 %v546
    %v548 = vpop.xlane.xlu0 %547
    %v549 = vsel %vm35, %v525, 0.0
    %550 = vadd.xlane.f32.xlu0 %v549
    %v551 = vpop.xlane.xlu0 %550
    %v552 = vsel %vm35, %v526, 0.0
    %553 = vadd.xlane.f32.xlu0 %v552
    %v554 = vpop.xlane.xlu0 %553
    %v555 = vsel %vm35, %v527, 0.0
    %556 = vadd.xlane.f32.xlu0 %v555
    %v557 = vpop.xlane.xlu0 %556
    %v558 = vsel %vm35, %v528, 0.0
    %559 = vadd.xlane.f32.xlu0 %v558
    %v560 = vpop.xlane.xlu0 %559
    %v561 = vsel %vm35, %v529, 0.0
    %562 = vadd.xlane.f32.xlu0 %v561
    %v563 = vpop.xlane.xlu0 %562
    %v564 = vsel %vm35, %v530, 0.0
    %565 = vadd.xlane.f32.xlu0 %v564
    %v566 = vpop.xlane.xlu0 %565
    %v567 = vsel %vm35, %v531, 0.0
    %568 = vadd.xlane.f32.xlu0 %v567
    %v569 = vpop.xlane.xlu0 %568
    %v570 = vsel %vm35, %v532, 0.0
    %571 = vadd.xlane.f32.xlu0 %v570
    %v572 = vpop.xlane.xlu0 %571
    %v573 = vsel %vm35, %v533, 0.0
    %574 = vadd.xlane.f32.xlu0 %v573
    %v575 = vpop.xlane.xlu0 %574
    %v576 = vsel %vm35, %v534, 0.0
    %577 = vadd.xlane.f32.xlu0 %v576
    %v578 = vpop.xlane.xlu0 %577
    %v579 = vsel %vm35, %v535, 0.0
    %580 = vadd.xlane.f32.xlu0 %v579
    %v581 = vpop.xlane.xlu0 %580
    %v582 = vsel %vm35, %v536, 0.0
    %583 = vadd.xlane.f32.xlu0 %v582
    %v584 = vpop.xlane.xlu0 %583
    %v585 = vld [vmem:[#allocation2] sm:$0x1]
    %v587 = vlaneseq
    %v588 = vshrl.u32 %v587, 7
    %v589 = vsub.s32 0, %v588
    %v590 = vrot.slane %v585, %v589
    %591 = vset.pattern.permute.xlu0 0
    %592 = vperm.xlu0 %591, %v590
    %v593 = vpop.permute.xlu0 %592
    %v595 = vadd.f32 %v539, %v593
    %v596 = vadd.f32 %v542, %v593
    %v597 = vadd.f32 %v545, %v593
    %v598 = vadd.f32 %v548, %v593
    %v599 = vadd.f32 %v551, %v593
    %v600 = vadd.f32 %v554, %v593
    %v601 = vadd.f32 %v557, %v593
    %v602 = vadd.f32 %v560, %v593
    %v603 = vadd.f32 %v563, %v593
    %v604 = vadd.f32 %v566, %v593
    %v605 = vadd.f32 %v569, %v593
    %v606 = vadd.f32 %v572, %v593
    %v607 = vadd.f32 %v575, %v593
    %v608 = vadd.f32 %v578, %v593
    %v609 = vadd.f32 %v581, %v593
    %v610 = vadd.f32 %v584, %v593
    %v627 = vlaneseq
    %v628 = vand.u32 %v627, 127
    %v629 = vlaneseq
    %v630 = vshrl.u32 %v629, 7
    %v631 = vsub.s32 %v628, %v630
    %v632 = vrot.slane %v595, %v631
    %v633 = vadd.s32 %v628, 4294967288
    %v634 = vlaneseq
    %v635 = vshrl.u32 %v634, 7
    %v636 = vsub.s32 %v633, %v635
    %v637 = vrot.slane %v596, %v636
    %vm638 = vcmask 130112
    %v639 = vsel %vm638, %v637, %v632
    %v640 = vadd.s32 %v628, 4294967280
    %v641 = vlaneseq
    %v642 = vshrl.u32 %v641, 7
    %v643 = vsub.s32 %v640, %v642
    %v644 = vrot.slane %v597, %v643
    %vm645 = vcmask 195712
    %v646 = vsel %vm645, %v644, %v639
    %v647 = vadd.s32 %v628, 4294967272
    %v648 = vlaneseq
    %v649 = vshrl.u32 %v648, 7
    %v650 = vsub.s32 %v647, %v649
    %v651 = vrot.slane %v598, %v650
    %vm652 = vcmask 261312
    %v653 = vsel %vm652, %v651, %v646
    %v654 = vadd.s32 %v628, 4294967264
    %v655 = vlaneseq
    %v656 = vshrl.u32 %v655, 7
    %v657 = vsub.s32 %v654, %v656
    %v658 = vrot.slane %v599, %v657
    %vm659 = vcmask 326912
    %v660 = vsel %vm659, %v658, %v653
    %v661 = vadd.s32 %v628, 4294967256
    %v662 = vlaneseq
    %v663 = vshrl.u32 %v662, 7
    %v664 = vsub.s32 %v661, %v663
    %v665 = vrot.slane %v600, %v664
    %vm666 = vcmask 392512
    %v667 = vsel %vm666, %v665, %v660
    %v668 = vadd.s32 %v628, 4294967248
    %v669 = vlaneseq
    %v670 = vshrl.u32 %v669, 7
    %v671 = vsub.s32 %v668, %v670
    %v672 = vrot.slane %v601, %v671
    %vm673 = vcmask 458112
    %v674 = vsel %vm673, %v672, %v667
    %v675 = vadd.s32 %v628, 4294967240
    %v676 = vlaneseq
    %v677 = vshrl.u32 %v676, 7
    %v678 = vsub.s32 %v675, %v677
    %v679 = vrot.slane %v602, %v678
    %vm680 = vcmask 523712
    %v681 = vsel %vm680, %v679, %v674
    %v682 = vadd.s32 %v628, 4294967232
    %v683 = vlaneseq
    %v684 = vshrl.u32 %v683, 7
    %v685 = vsub.s32 %v682, %v684
    %v686 = vrot.slane %v603, %v685
    %vm687 = vcmask 589312
    %v688 = vsel %vm687, %v686, %v681
    %v689 = vadd.s32 %v628, 4294967224
    %v690 = vlaneseq
    %v691 = vshrl.u32 %v690, 7
    %v692 = vsub.s32 %v689, %v691
    %v693 = vrot.slane %v604, %v692
    %vm694 = vcmask 654912
    %v695 = vsel %vm694, %v693, %v688
    %v696 = vadd.s32 %v628, 4294967216
    %v697 = vlaneseq
    %v698 = vshrl.u32 %v697, 7
    %v699 = vsub.s32 %v696, %v698
    %v700 = vrot.slane %v605, %v699
    %vm701 = vcmask 720512
    %v702 = vsel %vm701, %v700, %v695
    %v703 = vadd.s32 %v628, 4294967208
    %v704 = vlaneseq
    %v705 = vshrl.u32 %v704, 7
    %v706 = vsub.s32 %v703, %v705
    %v707 = vrot.slane %v606, %v706
    %vm708 = vcmask 786112
    %v709 = vsel %vm708, %v707, %v702
    %v710 = vadd.s32 %v628, 4294967200
    %v711 = vlaneseq
    %v712 = vshrl.u32 %v711, 7
    %v713 = vsub.s32 %v710, %v712
    %v714 = vrot.slane %v607, %v713
    %vm715 = vcmask 851712
    %v716 = vsel %vm715, %v714, %v709
    %v717 = vadd.s32 %v628, 4294967192
    %v718 = vlaneseq
    %v719 = vshrl.u32 %v718, 7
    %v720 = vsub.s32 %v717, %v719
    %v721 = vrot.slane %v608, %v720
    %vm722 = vcmask 917312
    %v723 = vsel %vm722, %v721, %v716
    %v724 = vadd.s32 %v628, 4294967184
    %v725 = vlaneseq
    %v726 = vshrl.u32 %v725, 7
    %v727 = vsub.s32 %v724, %v726
    %v728 = vrot.slane %v609, %v727
    %vm729 = vcmask 982912
    %v730 = vsel %vm729, %v728, %v723
    %v731 = vadd.s32 %v628, 4294967176
    %v732 = vlaneseq
    %v733 = vshrl.u32 %v732, 7
    %v734 = vsub.s32 %v731, %v733
    %v735 = vrot.slane %v610, %v734
    %vm736 = vcmask 1048512
    %v737 = vsel %vm736, %v735, %v730
    %739 = vst [vmem:[#allocation3] sm:$0x1] %v737
    // Predicated region
    $region30: #{tpu_custom_call.1} parent=1 // pred_check
      _
    $region31: #{tpu_custom_call.1} parent=1 // pred_check_branch
      %741 = sbr.rel (0) target = $region33
    $region32: #{tpu_custom_call.1} parent=1 // pred_region
      %s743 = ssub.s32 16, 16
      %744 = vsyncadd [#allocation4], %s743
      %s746 = sshll.u32 [#allocation3], 4
      %s747 = int_to_ptr.vmem [resolvable:$true] %s746
      %749 = dma.vmem_to_hbm [thread:$0]  %s747, 16, %s7, [#allocation4]
    $region33: #{tpu_custom_call.1} parent=1 // pred_fallthru
      _
    // Predicated region
    $region34: #{tpu_custom_call.1} parent=1 // pred_check
      _
    $region35: #{tpu_custom_call.1} parent=1 // pred_check_branch
      %751 = sbr.rel (0) target = $region37
    $region36: #{tpu_custom_call.1} parent=1 // pred_region
      %752 = dma.done [#allocation4], 16
    $region37: #{tpu_custom_call.1} parent=1 // pred_fallthru
      _
    %753 = vsyncpa [#allocation4], 1

</llo_original>
